<compile_context>
chip_gen: v6e
topology: v6e:2x2x1
jax: 0.10.0
libtpu: 0.0.40
codegen_flags: <defaults>
</compile_context>

<pallas_src>
import functools

import jax
import jax.numpy as jnp
from jax.experimental import pallas as pl
from jax.experimental.pallas import tpu as pltpu

_LANE = 128
_SUBLANE = 8


def _round_up(n, m):
    return ((n + m - 1) // m) * m


def _cdiv(a, b):
    return -(-a // b)


def _pad2(a, rows, cols):
    r, c = a.shape
    return jnp.pad(a, ((0, rows - r), (0, cols - c)))


def _vmem_cap_bytes():
    """Per-core VMEM cap: ~100 MiB on v5e/v6e (128 MiB phys), ~56 MiB on v7x."""
    try:
        cap = getattr(pltpu.get_tpu_info(), "vmem_capacity_bytes", None)
        if cap:
            return min(int(cap * 0.875), 100 << 20)
    except Exception:
        pass
    return 56 << 20  # conservative default: v7x has only 64 MiB per TensorCore


def _default_align(compute_dtype):
    """K/N feature padding: 256 fills the 2x256x256 MXU on v6e/v7x (bf16);
    128 on v5e (128x128 MXU) or for f32."""
    if jnp.dtype(compute_dtype).itemsize >= 4:
        return _LANE
    try:
        kind = jax.devices()[0].device_kind.lower()
    except Exception:
        kind = ""
    if "v5 lite" in kind or "v5e" in kind or "v5litepod" in kind:
        return _LANE
    return 256


# ------------------------------ Pallas kernel -------------------------------

def _make_fused_mlp_kernel(n_hidden):
    """Fused MLP kernel.

    Refs (positional): x, (w_i, shift_i) * n_hidden, w_out, b_out, o_ref.
    Hidden layer:  h = relu(h @ W'_i + shift_i)   (BN+bias folded into W'/shift)
    Final layer :  o = h @ W_out + b_out
    Matmuls accumulate in f32 (preferred_element_type); the epilogue is f32;
    activations are cast to the weight dtype only for the next MXU pass.
    """

    def kernel(*refs):
        x_ref = refs[0]
        o_ref = refs[-1]
        h = x_ref[...]
        idx = 1
        for _ in range(n_hidden):
            w_ref, s_ref = refs[idx], refs[idx + 1]
            idx += 2
            y = jnp.dot(h.astype(w_ref.dtype), w_ref[...],
                        preferred_element_type=jnp.float32)
            h = jnp.maximum(y + s_ref[...], 0.0)   # f32 epilogue (folded BN+bias)
        w_ref, b_ref = refs[idx], refs[idx + 1]
        y = jnp.dot(h.astype(w_ref.dtype), w_ref[...],
                    preferred_element_type=jnp.float32)
        o_ref[...] = (y + b_ref[...]).astype(o_ref.dtype)

    return kernel


def _fused_mlp_call(x_pad, hidden_params, final_params, *, tm, out_dtype,
                    use_pipeline_mode):
    """One pallas_call running all layers; grid tiles the (padded) batch."""
    B_pad, F_in = x_pad.shape
    w_out, b_out = final_params
    O_pad = w_out.shape[1]
    grid = (B_pad // tm,)

    def resident_spec(shape):
        # Grid-invariant weights/shifts: single-buffered residents (halves
        # their VMEM footprint vs the default double-buffering).
        if use_pipeline_mode:
            return pl.BlockSpec(shape, lambda i: (0, 0),
                                pipeline_mode=pl.Buffered(1))
        return pl.BlockSpec(shape, lambda i: (0, 0))

    # x: batch-tiled, default double-buffering. (If profiling shows an exposed
    # x DMA for tiny layer widths, bump this spec to pipeline_mode=Buffered(3).)
    in_specs = [pl.BlockSpec((tm, F_in), lambda i: (i, 0))]
    args = [x_pad]
    flops = 0
    for (w, s) in hidden_params:
        in_specs.append(resident_spec(w.shape))
        in_specs.append(resident_spec(s.shape))
        args += [w, s]
        flops += 2 * B_pad * w.shape[0] * w.shape[1]
    in_specs.append(resident_spec(w_out.shape))
    in_specs.append(resident_spec(b_out.shape))
    args += [w_out, b_out]
    flops += 2 * B_pad * w_out.shape[0] * w_out.shape[1]

    weight_bytes = sum(int(a.size) * a.dtype.itemsize for a in args[1:])
    out_itemsize = jnp.dtype(out_dtype).itemsize
    bytes_acc = (int(x_pad.size) * x_pad.dtype.itemsize + weight_bytes
                 + B_pad * O_pad * out_itemsize)

    # VMEM budget: resident weights (x1 if single-buffered, else x2) +
    # double-buffered x/out tiles + f32 activation headroom + slack; capped
    # below physical VMEM for the chip generation.
    max_width = max([F_in] + [w.shape[1] for w, _ in hidden_params] + [O_pad])
    resident = weight_bytes * (1 if use_pipeline_mode else 2)
    io_tiles = 2 * tm * (F_in * x_pad.dtype.itemsize + O_pad * out_itemsize)
    act_headroom = 2 * tm * max_width * 4
    need = resident + io_tiles + act_headroom + (4 << 20)
    vmem_limit = int(min(_vmem_cap_bytes(), max(32 << 20, need)))
    # TODO(synk): when `resident` approaches the per-core VMEM budget (wide
    # layers, esp. v7x's 64 MiB/TC), switch to K/N tiling with an f32 VMEM
    # accumulator (grid=(B/tm, N/tn, K/tk) + pl.when init/finalize) instead of
    # keeping every weight matrix resident.

    return pl.pallas_call(
        _make_fused_mlp_kernel(len(hidden_params)),
        out_shape=jax.ShapeDtypeStruct((B_pad, O_pad), out_dtype),
        grid=grid,
        in_specs=in_specs,
        out_specs=pl.BlockSpec((tm, O_pad), lambda i: (i, 0)),
        compiler_params=pltpu.CompilerParams(
            dimension_semantics=("parallel",),
            vmem_limit_bytes=vmem_limit),
        cost_estimate=pl.CostEstimate(flops=flops, transcendentals=0,
                                      bytes_accessed=bytes_acc),
    )(*args)


# --------------------------- parameter construction --------------------------

def init_raw_params(key, filters):
    """Synthetic params mirroring the PyTorch module's shapes (eval mode).

    filters = [f0, ..., f_{n-1}]:
      i+2 < n : Linear(f_i, f_{i+1}) + BatchNorm1d(f_{i+1}) + ReLU + Dropout
      i+1 < n : Linear(f_i, f_{i+1})        (final, plain)
    Weights stored pre-transposed as [in, out].
    """
    n = len(filters)
    params = []
    for i in range(n):
        if i + 1 >= n:
            break
        fin, fout = filters[i], filters[i + 1]
        key, kw, kb, km, kv, kg, kbt = jax.random.split(key, 7)
        bound = 1.0 / float(jnp.sqrt(jnp.float32(fin)))
        w = jax.random.uniform(kw, (fin, fout), jnp.float32, -bound, bound)
        b = jax.random.uniform(kb, (fout,), jnp.float32, -bound, bound)
        if i + 2 < n:
            mean = 0.1 * jax.random.normal(km, (fout,), jnp.float32)
            var = 1.0 + 0.1 * jax.random.uniform(kv, (fout,), jnp.float32)
            gamma = 1.0 + 0.1 * jax.random.normal(kg, (fout,), jnp.float32)
            beta = 0.1 * jax.random.normal(kbt, (fout,), jnp.float32)
            params.append(("hidden", (w, b, mean, var, gamma, beta, 1e-5)))
        else:
            params.append(("final", (w, b)))
    return params


def fold_and_pad(raw_params, compute_dtype=jnp.bfloat16, align=None):
    """Fold BN(+bias) into weights (in f32) and zero-pad feature dims.

    * The FIRST layer's input (K) dim is kept UN-padded so x needs no feature
      padding in the wrapper (no extra HBM copy of x).
    * Hidden K/N dims are padded to `align` (256 for bf16 on v6e/v7x, else 128);
      the final output dim is padded to 128 (lane-dense stores).
    Returns (hidden_params, final_params): pure pytrees of arrays (jit-safe).
    Weights are cast to `compute_dtype`; shifts/biases stay f32 (f32 epilogue).
    """
    if align is None:
        align = _default_align(compute_dtype)
    hidden = []
    final = None
    first = True
    for kind, p in raw_params:
        if kind == "hidden":
            w, b, mean, var, gamma, beta, eps = p
            scale = gamma / jnp.sqrt(var + eps)          # fold BN (eval mode)
            w_f = w * scale[None, :]
            shift = (b - mean) * scale + beta
            fin_p = w.shape[0] if first else _round_up(w.shape[0], align)
            fout_p = _round_up(w.shape[1], align)
            hidden.append((
                _pad2(w_f, fin_p, fout_p).astype(compute_dtype),
                _pad2(shift[None, :], 1, fout_p).astype(jnp.float32),
            ))
        else:
            w, b = p
            fin_p = w.shape[0] if first else _round_up(w.shape[0], align)
            fout_p = _round_up(w.shape[1], _LANE)
            final = (
                _pad2(w, fin_p, fout_p).astype(compute_dtype),
                _pad2(b[None, :], 1, fout_p).astype(jnp.float32),
            )
        first = False
    return tuple(hidden), final


# -------------------------------- forward pass -------------------------------

def _pick_batch_tiling(B, row_align, max_width):
    """Choose (B_pad, tm).

    - tiny batches: a single tile.
    - small/medium: >=2 'parallel' programs so v7x's 2nd TensorCore gets work
      (pure loop, no cost, on single-TC v5e/v6e).
    - large: tm up to 512 to amortize per-step overhead and MXU weight pushes,
      capped so f32 intermediate activations stay within a ~16 MiB budget.
    """
    B_al = _round_up(B, row_align)
    if B_al < 2 * row_align:
        return B_al, B_al
    if B_al <= 1024:
        tm = _round_up(_cdiv(B_al, 2), row_align)
    else:
        tm = 512
    while tm > row_align and 2 * tm * max_width * 4 > (16 << 20):
        tm = _round_up(tm // 2, row_align)
    B_pad = _round_up(B_al, tm)
    return B_pad, tm


@functools.partial(jax.jit,
                   static_argnames=("out_features", "out_dtype",
                                    "use_pipeline_mode"))
def _mlp_forward_impl(x_nchw, hidden_params, final_params, *, out_features,
                      out_dtype, use_pipeline_mode):
    B = x_nchw.shape[0]
    x = x_nchw.reshape(B, -1)                 # Flatten, same order as .view(B,-1)
    first_w = hidden_params[0][0] if len(hidden_params) else final_params[0]
    compute_dtype = first_w.dtype
    assert x.shape[1] == first_w.shape[0], "flattened feature dim mismatch"

    # bf16 packs 16 rows per vreg -> 16-row batch tiles; f32 uses 8.
    row_align = 16 if compute_dtype == jnp.bfloat16 else _SUBLANE
    widths = ([x.shape[1]] + [w.shape[1] for w, _ in hidden_params]
              + [final_params[0].shape[1]])
    B_pad, tm = _pick_batch_tiling(B, row_align, max(widths))

    if B_pad != B:
        # One fused pad(+cast) op; no feature padding needed since the first
        # layer's K dim is un-padded.
        x = jnp.pad(x, ((0, B_pad - B), (0, 0))).astype(compute_dtype)
    # else: pass x straight through (any dtype); the kernel casts it for the
    # MXU, which is cheaper than materializing a cast copy in HBM.

    out_pad = _fused_mlp_call(x, hidden_params, final_params, tm=tm,
                              out_dtype=out_dtype,
                              use_pipeline_mode=use_pipeline_mode)
    return out_pad[:B, :out_features]


_PIPELINE_MODE_OK = None  # memo: does this Pallas accept BlockSpec pipeline_mode?


def mlp_forward(x_nchw, hidden_params, final_params, *, out_features,
                out_dtype=jnp.float32):
    """Fused MLP forward (eval mode). Prefers single-buffered resident weights
    (pipeline_mode=pl.Buffered(1)); falls back to default double-buffering if
    this Pallas build rejects pipeline_mode."""
    global _PIPELINE_MODE_OK
    if _PIPELINE_MODE_OK is not False:
        try:
            out = _mlp_forward_impl(x_nchw, hidden_params, final_params,
                                    out_features=out_features,
                                    out_dtype=out_dtype,
                                    use_pipeline_mode=True)
            _PIPELINE_MODE_OK = True
            return out
        except Exception:
            if _PIPELINE_MODE_OK:
                raise
            _PIPELINE_MODE_OK = False
    return _mlp_forward_impl(x_nchw, hidden_params, final_params,
                             out_features=out_features, out_dtype=out_dtype,
                             use_pipeline_mode=False)


# pure-JAX reference (un-folded params, f32) for correctness check
def mlp_forward_ref(x_nchw, raw_params):
    B = x_nchw.shape[0]
    x = x_nchw.reshape(B, -1).astype(jnp.float32)
    for kind, p in raw_params:
        if kind == "hidden":
            w, b, mean, var, gamma, beta, eps = p
            y = x @ w + b
            y = (y - mean) / jnp.sqrt(var + eps) * gamma + beta
            x = jnp.maximum(y, 0.0)
        else:
            w, b = p
            x = x @ w + b
    return x


if __name__ == "__main__":
    key = jax.random.PRNGKey(0)
    kx, kx2, kx3, kp = jax.random.split(key, 4)

    # small shapes: batch=2, channels=4, spatial=4x4 -> flattened features = 64
    B, C, H, W = 2, 4, 4, 4
    x = jax.random.normal(kx, (B, C, H, W), jnp.float32)

    # filters = [64, 32, 32, 16]:
    #   layer1: Linear(64,32)+BN+ReLU+Dropout
    #   layer2: Linear(32,32)+BN+ReLU+Dropout
    #   layer3: Linear(32,16)           (plain final Linear)
    filters = [C * H * W, 32, 32, 16]
    raw_params = init_raw_params(kp, filters)
    ref = mlp_forward_ref(x, raw_params)

    # f32 weight path (tight numerical check)
    hid_f32, fin_f32 = fold_and_pad(raw_params, jnp.float32)
    out = jax.block_until_ready(
        mlp_forward(x, hid_f32, fin_f32, out_features=filters[-1]))
    assert out.shape == (B, filters[-1]), out.shape
    assert jnp.allclose(out, ref, atol=1e-4, rtol=1e-4), "f32 mismatch vs reference"

    # bf16 weight path (recommended on all TPU generations; f32 accum+epilogue)
    hid_bf16, fin_bf16 = fold_and_pad(raw_params, jnp.bfloat16)
    out_bf16 = jax.block_until_ready(
        mlp_forward(x, hid_bf16, fin_bf16, out_features=filters[-1]))
    assert jnp.allclose(out_bf16, ref, atol=0.15, rtol=0.15), \
        "bf16 mismatch vs reference"

    # larger batch: grid > 1 ('parallel' tiles keep both v7x TensorCores busy)
    B2 = 256
    x2 = jax.random.normal(kx2, (B2, C, H, W), jnp.float32)
    out2 = jax.block_until_ready(
        mlp_forward(x2, hid_f32, fin_f32, out_features=filters[-1]))
    ref2 = mlp_forward_ref(x2, raw_params)
    assert jnp.allclose(out2, ref2, atol=1e-4, rtol=1e-4), "batched mismatch"

    # ragged batch: exercises the fused batch-pad(+cast) path and 2-tile split
    B3 = 20
    x3 = jax.random.normal(kx3, (B3, C, H, W), jnp.float32)
    out3 = jax.block_until_ready(
        mlp_forward(x3, hid_bf16, fin_bf16, out_features=filters[-1]))
    ref3 = mlp_forward_ref(x3, raw_params)
    assert jnp.allclose(out3, ref3, atol=0.15, rtol=0.15), "ragged-batch mismatch"

    print("KERNEL_OK")
</pallas_src>

<mosaic_0001>
module attributes {stable_mosaic.version = 11 : i64} {
  func.func @kernel(%arg0: i32, %arg1: memref<8x64xf32, #tpu.memory_space<vmem>>, %arg2: memref<64x128xf32, #tpu.memory_space<vmem>>, %arg3: memref<1x128xf32, #tpu.memory_space<vmem>>, %arg4: memref<128x128xf32, #tpu.memory_space<vmem>>, %arg5: memref<1x128xf32, #tpu.memory_space<vmem>>, %arg6: memref<128x128xf32, #tpu.memory_space<vmem>>, %arg7: memref<1x128xf32, #tpu.memory_space<vmem>>, %arg8: memref<8x128xf32, #tpu.memory_space<vmem>>) attributes {dimension_semantics = [#tpu.dimension_semantics<parallel>], iteration_bounds = array<i64: 1>, scalar_prefetch = 0 : i64, scratch_operands = 0 : i64, tpu.core_type = #tpu.core_type<tc>, window_params = [{transform_indices = @transform_0, window_bounds = array<i64: 8, 64>}, {pipeline_mode = #tpu.pipeline_mode<synchronous>, transform_indices = @transform_1, window_bounds = array<i64: 64, 128>}, {pipeline_mode = #tpu.pipeline_mode<synchronous>, transform_indices = @transform_2, window_bounds = array<i64: 1, 128>}, {pipeline_mode = #tpu.pipeline_mode<synchronous>, transform_indices = @transform_3, window_bounds = array<i64: 128, 128>}, {pipeline_mode = #tpu.pipeline_mode<synchronous>, transform_indices = @transform_4, window_bounds = array<i64: 1, 128>}, {pipeline_mode = #tpu.pipeline_mode<synchronous>, transform_indices = @transform_5, window_bounds = array<i64: 128, 128>}, {pipeline_mode = #tpu.pipeline_mode<synchronous>, transform_indices = @transform_6, window_bounds = array<i64: 1, 128>}, {transform_indices = @transform_7, window_bounds = array<i64: 8, 128>}]} {
    %c0 = arith.constant 0 : index
    %c0_0 = arith.constant 0 : index
    %0 = vector.load %arg1[%c0, %c0_0] : memref<8x64xf32, #tpu.memory_space<vmem>>, vector<8x64xf32>
    %c0_1 = arith.constant 0 : index
    %c0_2 = arith.constant 0 : index
    %1 = vector.load %arg2[%c0_1, %c0_2] : memref<64x128xf32, #tpu.memory_space<vmem>>, vector<64x128xf32>
    %cst = arith.constant dense<0.000000e+00> : vector<8x128xf32>
    %2 = tpu.matmul %0, %1, %cst {dimension_numbers = #tpu.dot_dimension_numbers<[1], [0], [0], [1], [0, 0, 1, 1], [], []>} : vector<8x64xf32>, vector<64x128xf32>, vector<8x128xf32> -> vector<8x128xf32>
    %c0_3 = arith.constant 0 : index
    %c0_4 = arith.constant 0 : index
    %3 = vector.load %arg3[%c0_3, %c0_4] : memref<1x128xf32, #tpu.memory_space<vmem>>, vector<1x128xf32>
    %4 = vector.broadcast %3 : vector<1x128xf32> to vector<8x128xf32>
    %5 = arith.addf %2, %4 : vector<8x128xf32>
    %cst_5 = arith.constant 0.000000e+00 : f32
    %6 = vector.broadcast %cst_5 : f32 to vector<8x128xf32>
    %7 = arith.maximumf %5, %6 : vector<8x128xf32>
    %c0_6 = arith.constant 0 : index
    %c0_7 = arith.constant 0 : index
    %8 = vector.load %arg4[%c0_6, %c0_7] : memref<128x128xf32, #tpu.memory_space<vmem>>, vector<128x128xf32>
    %cst_8 = arith.constant dense<0.000000e+00> : vector<8x128xf32>
    %9 = tpu.matmul %7, %8, %cst_8 {dimension_numbers = #tpu.dot_dimension_numbers<[1], [0], [0], [1], [0, 0, 1, 1], [], []>} : vector<8x128xf32>, vector<128x128xf32>, vector<8x128xf32> -> vector<8x128xf32>
    %c0_9 = arith.constant 0 : index
    %c0_10 = arith.constant 0 : index
    %10 = vector.load %arg5[%c0_9, %c0_10] : memref<1x128xf32, #tpu.memory_space<vmem>>, vector<1x128xf32>
    %11 = vector.broadcast %10 : vector<1x128xf32> to vector<8x128xf32>
    %12 = arith.addf %9, %11 : vector<8x128xf32>
    %cst_11 = arith.constant 0.000000e+00 : f32
    %13 = vector.broadcast %cst_11 : f32 to vector<8x128xf32>
    %14 = arith.maximumf %12, %13 : vector<8x128xf32>
    %c0_12 = arith.constant 0 : index
    %c0_13 = arith.constant 0 : index
    %15 = vector.load %arg6[%c0_12, %c0_13] : memref<128x128xf32, #tpu.memory_space<vmem>>, vector<128x128xf32>
    %cst_14 = arith.constant dense<0.000000e+00> : vector<8x128xf32>
    %16 = tpu.matmul %14, %15, %cst_14 {dimension_numbers = #tpu.dot_dimension_numbers<[1], [0], [0], [1], [0, 0, 1, 1], [], []>} : vector<8x128xf32>, vector<128x128xf32>, vector<8x128xf32> -> vector<8x128xf32>
    %c0_15 = arith.constant 0 : index
    %c0_16 = arith.constant 0 : index
    %17 = vector.load %arg7[%c0_15, %c0_16] : memref<1x128xf32, #tpu.memory_space<vmem>>, vector<1x128xf32>
    %18 = vector.broadcast %17 : vector<1x128xf32> to vector<8x128xf32>
    %19 = arith.addf %16, %18 : vector<8x128xf32>
    %c0_17 = arith.constant 0 : index
    %c0_18 = arith.constant 0 : index
    %20 = vector.load %arg8[%c0_17, %c0_18] : memref<8x128xf32, #tpu.memory_space<vmem>>, vector<8x128xf32>
    tpu.vector_store %arg8[%c0_17, %c0_18], %19 {strides = array<i32>} : memref<8x128xf32, #tpu.memory_space<vmem>>, vector<8x128xf32>,
    return
  }
  func.func @transform_0(%arg0: i32) -> (i32, i32) {
    %c0_i32 = arith.constant 0 : i32
    %c0_i32_0 = arith.constant 0 : i32
    return %arg0, %c0_i32 : i32, i32
  }
  func.func @transform_1(%arg0: i32) -> (i32, i32) {
    %c0_i32 = arith.constant 0 : i32
    %c0_i32_0 = arith.constant 0 : i32
    %c0_i32_1 = arith.constant 0 : i32
    return %c0_i32, %c0_i32_0 : i32, i32
  }
  func.func @transform_2(%arg0: i32) -> (i32, i32) {
    %c0_i32 = arith.constant 0 : i32
    %c0_i32_0 = arith.constant 0 : i32
    %c0_i32_1 = arith.constant 0 : i32
    return %c0_i32, %c0_i32_0 : i32, i32
  }
  func.func @transform_3(%arg0: i32) -> (i32, i32) {
    %c0_i32 = arith.constant 0 : i32
    %c0_i32_0 = arith.constant 0 : i32
    %c0_i32_1 = arith.constant 0 : i32
    return %c0_i32, %c0_i32_0 : i32, i32
  }
  func.func @transform_4(%arg0: i32) -> (i32, i32) {
    %c0_i32 = arith.constant 0 : i32
    %c0_i32_0 = arith.constant 0 : i32
    %c0_i32_1 = arith.constant 0 : i32
    return %c0_i32, %c0_i32_0 : i32, i32
  }
  func.func @transform_5(%arg0: i32) -> (i32, i32) {
    %c0_i32 = arith.constant 0 : i32
    %c0_i32_0 = arith.constant 0 : i32
    %c0_i32_1 = arith.constant 0 : i32
    return %c0_i32, %c0_i32_0 : i32, i32
  }
  func.func @transform_6(%arg0: i32) -> (i32, i32) {
    %c0_i32 = arith.constant 0 : i32
    %c0_i32_0 = arith.constant 0 : i32
    %c0_i32_1 = arith.constant 0 : i32
    return %c0_i32, %c0_i32_0 : i32, i32
  }
  func.func @transform_7(%arg0: i32) -> (i32, i32) {
    %c0_i32 = arith.constant 0 : i32
    %c0_i32_0 = arith.constant 0 : i32
    return %arg0, %c0_i32 : i32, i32
  }
}

module attributes {stable_mosaic.version = 11 : i64} {
  func.func @kernel(%arg0: i32, %arg1: memref<8x64xf32, #tpu.memory_space<vmem>>, %arg2: memref<64x128xf32, #tpu.memory_space<vmem>>, %arg3: memref<1x128xf32, #tpu.memory_space<vmem>>, %arg4: memref<128x128xf32, #tpu.memory_space<vmem>>, %arg5: memref<1x128xf32, #tpu.memory_space<vmem>>, %arg6: memref<128x128xf32, #tpu.memory_space<vmem>>, %arg7: memref<1x128xf32, #tpu.memory_space<vmem>>, %arg8: memref<8x128xf32, #tpu.memory_space<vmem>>) attributes {dimension_semantics = [#tpu.dimension_semantics<parallel>], iteration_bounds = array<i64: 1>, scalar_prefetch = 0 : i64, scratch_operands = 0 : i64, tpu.core_type = #tpu.core_type<tc>, window_params = [{transform_indices = @transform_0, window_bounds = array<i64: 8, 64>}, {pipeline_mode = #tpu.pipeline_mode<synchronous>, transform_indices = @transform_1, window_bounds = array<i64: 64, 128>}, {pipeline_mode = #tpu.pipeline_mode<synchronous>, transform_indices = @transform_2, window_bounds = array<i64: 1, 128>}, {pipeline_mode = #tpu.pipeline_mode<synchronous>, transform_indices = @transform_3, window_bounds = array<i64: 128, 128>}, {pipeline_mode = #tpu.pipeline_mode<synchronous>, transform_indices = @transform_4, window_bounds = array<i64: 1, 128>}, {pipeline_mode = #tpu.pipeline_mode<synchronous>, transform_indices = @transform_5, window_bounds = array<i64: 128, 128>}, {pipeline_mode = #tpu.pipeline_mode<synchronous>, transform_indices = @transform_6, window_bounds = array<i64: 1, 128>}, {transform_indices = @transform_7, window_bounds = array<i64: 8, 128>}]} {
    %c0 = arith.constant 0 : index
    %c0_0 = arith.constant 0 : index
    %0 = vector.load %arg1[%c0, %c0_0] : memref<8x64xf32, #tpu.memory_space<vmem>>, vector<8x64xf32>
    %c0_1 = arith.constant 0 : index
    %c0_2 = arith.constant 0 : index
    %1 = vector.load %arg2[%c0_1, %c0_2] : memref<64x128xf32, #tpu.memory_space<vmem>>, vector<64x128xf32>
    %cst = arith.constant dense<0.000000e+00> : vector<8x128xf32>
    %2 = tpu.matmul %0, %1, %cst {dimension_numbers = #tpu.dot_dimension_numbers<[1], [0], [0], [1], [0, 0, 1, 1], [], []>} : vector<8x64xf32>, vector<64x128xf32>, vector<8x128xf32> -> vector<8x128xf32>
    %c0_3 = arith.constant 0 : index
    %c0_4 = arith.constant 0 : index
    %3 = vector.load %arg3[%c0_3, %c0_4] : memref<1x128xf32, #tpu.memory_space<vmem>>, vector<1x128xf32>
    %4 = vector.broadcast %3 : vector<1x128xf32> to vector<8x128xf32>
    %5 = arith.addf %2, %4 : vector<8x128xf32>
    %cst_5 = arith.constant 0.000000e+00 : f32
    %6 = vector.broadcast %cst_5 : f32 to vector<8x128xf32>
    %7 = arith.maximumf %5, %6 : vector<8x128xf32>
    %c0_6 = arith.constant 0 : index
    %c0_7 = arith.constant 0 : index
    %8 = vector.load %arg4[%c0_6, %c0_7] : memref<128x128xf32, #tpu.memory_space<vmem>>, vector<128x128xf32>
    %cst_8 = arith.constant dense<0.000000e+00> : vector<8x128xf32>
    %9 = tpu.matmul %7, %8, %cst_8 {dimension_numbers = #tpu.dot_dimension_numbers<[1], [0], [0], [1], [0, 0, 1, 1], [], []>} : vector<8x128xf32>, vector<128x128xf32>, vector<8x128xf32> -> vector<8x128xf32>
    %c0_9 = arith.constant 0 : index
    %c0_10 = arith.constant 0 : index
    %10 = vector.load %arg5[%c0_9, %c0_10] : memref<1x128xf32, #tpu.memory_space<vmem>>, vector<1x128xf32>
    %11 = vector.broadcast %10 : vector<1x128xf32> to vector<8x128xf32>
    %12 = arith.addf %9, %11 : vector<8x128xf32>
    %cst_11 = arith.constant 0.000000e+00 : f32
    %13 = vector.broadcast %cst_11 : f32 to vector<8x128xf32>
    %14 = arith.maximumf %12, %13 : vector<8x128xf32>
    %c0_12 = arith.constant 0 : index
    %c0_13 = arith.constant 0 : index
    %15 = vector.load %arg6[%c0_12, %c0_13] : memref<128x128xf32, #tpu.memory_space<vmem>>, vector<128x128xf32>
    %cst_14 = arith.constant dense<0.000000e+00> : vector<8x128xf32>
    %16 = tpu.matmul %14, %15, %cst_14 {dimension_numbers = #tpu.dot_dimension_numbers<[1], [0], [0], [1], [0, 0, 1, 1], [], []>} : vector<8x128xf32>, vector<128x128xf32>, vector<8x128xf32> -> vector<8x128xf32>
    %c0_15 = arith.constant 0 : index
    %c0_16 = arith.constant 0 : index
    %17 = vector.load %arg7[%c0_15, %c0_16] : memref<1x128xf32, #tpu.memory_space<vmem>>, vector<1x128xf32>
    %18 = vector.broadcast %17 : vector<1x128xf32> to vector<8x128xf32>
    %19 = arith.addf %16, %18 : vector<8x128xf32>
    %c0_17 = arith.constant 0 : index
    %c0_18 = arith.constant 0 : index
    %20 = vector.load %arg8[%c0_17, %c0_18] : memref<8x128xf32, #tpu.memory_space<vmem>>, vector<8x128xf32>
    tpu.vector_store %arg8[%c0_17, %c0_18], %19 {strides = array<i32>} : memref<8x128xf32, #tpu.memory_space<vmem>>, vector<8x128xf32>,
    return
  }
  func.func @transform_0(%arg0: i32) -> (i32, i32) {
    %c0_i32 = arith.constant 0 : i32
    %c0_i32_0 = arith.constant 0 : i32
    return %arg0, %c0_i32 : i32, i32
  }
  func.func @transform_1(%arg0: i32) -> (i32, i32) {
    %c0_i32 = arith.constant 0 : i32
    %c0_i32_0 = arith.constant 0 : i32
    %c0_i32_1 = arith.constant 0 : i32
    return %c0_i32, %c0_i32_0 : i32, i32
  }
  func.func @transform_2(%arg0: i32) -> (i32, i32) {
    %c0_i32 = arith.constant 0 : i32
    %c0_i32_0 = arith.constant 0 : i32
    %c0_i32_1 = arith.constant 0 : i32
    return %c0_i32, %c0_i32_0 : i32, i32
  }
  func.func @transform_3(%arg0: i32) -> (i32, i32) {
    %c0_i32 = arith.constant 0 : i32
    %c0_i32_0 = arith.constant 0 : i32
    %c0_i32_1 = arith.constant 0 : i32
    return %c0_i32, %c0_i32_0 : i32, i32
  }
  func.func @transform_4(%arg0: i32) -> (i32, i32) {
    %c0_i32 = arith.constant 0 : i32
    %c0_i32_0 = arith.constant 0 : i32
    %c0_i32_1 = arith.constant 0 : i32
    return %c0_i32, %c0_i32_0 : i32, i32
  }
  func.func @transform_5(%arg0: i32) -> (i32, i32) {
    %c0_i32 = arith.constant 0 : i32
    %c0_i32_0 = arith.constant 0 : i32
    %c0_i32_1 = arith.constant 0 : i32
    return %c0_i32, %c0_i32_0 : i32, i32
  }
  func.func @transform_6(%arg0: i32) -> (i32, i32) {
    %c0_i32 = arith.constant 0 : i32
    %c0_i32_0 = arith.constant 0 : i32
    %c0_i32_1 = arith.constant 0 : i32
    return %c0_i32, %c0_i32_0 : i32, i32
  }
  func.func @transform_7(%arg0: i32) -> (i32, i32) {
    %c0_i32 = arith.constant 0 : i32
    %c0_i32_0 = arith.constant 0 : i32
    return %arg0, %c0_i32 : i32, i32
  }
}

</mosaic_0001>

<llo_original>
// kernel: _mlp_forward_impl.1
$region0: #{_mlp_forward_impl.1}
  #allocation0 [shape = 'u32[]', space=smem, size = 0x4, offset = 0x4, fixed_abs, tag = 'smem constant byte address 0x4 - core index']
  #allocation1 [shape = 'u32[144,128]{1,0:T(1,128)}', space=vmem, size = 0x12000, scoped, tag = 'internal scratch']
  %s0 = inlined_call_operand.vmem [shape: f32[8,64], index: 0, kind: input, shape index: {}]
  %s1 = inlined_call_operand.hbm [shape: f32[64,128], index: 1, kind: input, shape index: {}]
  %s2 = inlined_call_operand.vmem [shape: f32[1,128], index: 2, kind: input, shape index: {}]
  %s3 = inlined_call_operand.hbm [shape: f32[128,128], index: 3, kind: input, shape index: {}]
  %s4 = inlined_call_operand.vmem [shape: f32[1,128], index: 4, kind: input, shape index: {}]
  %s5 = inlined_call_operand.hbm [shape: f32[128,128], index: 5, kind: input, shape index: {}]
  %s6 = inlined_call_operand.vmem [shape: f32[1,128], index: 6, kind: input, shape index: {}]
  %s7 = inlined_call_operand.vmem [shape: f32[8,128], index: 7, kind: output, shape index: {}]
  %s8 = sld [smem:[#allocation0]]
  $region50: #{_mlp_forward_impl.1} parent=0
    _
  %s10 = ssub.s32 1, %s8
  %s11 = scalar_select 0, %s10, %s8
  $region1: #{_mlp_forward_impl.1} parent=0
    #allocation2 [shape = 'u8[32768]{0}', space=vmem, size = 0x8000, scoped, tag = 'input window, operand 1, single buffered']
    #allocation3 [shape = 's32[1]{0}', space=sflag, size = 0x4, scoped, tag = 'scoped memory for _mlp_forward_impl.1']
    #allocation4 [shape = 'u8[65536]{0}', space=vmem, size = 0x10000, scoped, tag = 'input window, operand 3, single buffered']
    #allocation5 [shape = 's32[1]{0}', space=sflag, size = 0x4, scoped, tag = 'scoped memory for _mlp_forward_impl.1']
    #allocation6 [shape = 'u8[65536]{0}', space=vmem, size = 0x10000, scoped, tag = 'input window, operand 5, single buffered']
    %12 = vsyncpa [#allocation3], 0
    %13 = vsyncpa [#allocation5], 0
    // Predicated region
    $region2: #{_mlp_forward_impl.1} parent=1 // pred_check
      _
    $region3: #{_mlp_forward_impl.1} parent=1 // pred_check_branch
      %15 = sbr.rel (0) target = $region5
    $region4: #{_mlp_forward_impl.1} parent=1 // pred_region
      _
    $region5: #{_mlp_forward_impl.1} parent=1 // pred_fallthru
      _
    // Predicated region
    $region6: #{_mlp_forward_impl.1} parent=1 // pred_check
      _
    $region7: #{_mlp_forward_impl.1} parent=1 // pred_check_branch
      %17 = sbr.rel (0) target = $region9
    $region8: #{_mlp_forward_impl.1} parent=1 // pred_region
      %s19 = ssub.s32 1024, 1024
      %20 = vsyncadd [#allocation3], %s19
      %s21 = sshll.u32 [#allocation2], 4
      %s22 = int_to_ptr.vmem [resolvable:$true] %s21
      %27 = dma.hbm_to_vmem [thread:$0]  %s1, 1024, %s22, [#allocation3], 128, 128, 8
    $region9: #{_mlp_forward_impl.1} parent=1 // pred_fallthru
      _
    // Predicated region
    $region10: #{_mlp_forward_impl.1} parent=1 // pred_check
      _
    $region11: #{_mlp_forward_impl.1} parent=1 // pred_check_branch
      %29 = sbr.rel (0) target = $region13
    $region12: #{_mlp_forward_impl.1} parent=1 // pred_region
      _
    $region13: #{_mlp_forward_impl.1} parent=1 // pred_fallthru
      _
    // Predicated region
    $region14: #{_mlp_forward_impl.1} parent=1 // pred_check
      _
    $region15: #{_mlp_forward_impl.1} parent=1 // pred_check_branch
      %31 = sbr.rel (0) target = $region17
    $region16: #{_mlp_forward_impl.1} parent=1 // pred_region
      %s33 = ssub.s32 2048, 2048
      %34 = vsyncadd [#allocation5], %s33
      %s35 = sshll.u32 [#allocation4], 4
      %s36 = int_to_ptr.vmem [resolvable:$true] %s35
      %41 = dma.hbm_to_vmem [thread:$0]  %s3, 2048, %s36, [#allocation5], 128, 128, 8
    $region17: #{_mlp_forward_impl.1} parent=1 // pred_fallthru
      _
    // Predicated region
    $region18: #{_mlp_forward_impl.1} parent=1 // pred_check
      _
    $region19: #{_mlp_forward_impl.1} parent=1 // pred_check_branch
      %43 = sbr.rel (0) target = $region21
    $region20: #{_mlp_forward_impl.1} parent=1 // pred_region
      _
    $region21: #{_mlp_forward_impl.1} parent=1 // pred_fallthru
      _
    // Predicated region
    $region22: #{_mlp_forward_impl.1} parent=1 // pred_check
      _
    $region23: #{_mlp_forward_impl.1} parent=1 // pred_check_branch
      %45 = sbr.rel (0) target = $region25
    $region24: #{_mlp_forward_impl.1} parent=1 // pred_region
      %s47 = ssub.s32 2048, 2048
      %48 = vsyncadd [#allocation5], %s47
      %s49 = sshll.u32 [#allocation6], 4
      %s50 = int_to_ptr.vmem [resolvable:$true] %s49
      %55 = dma.hbm_to_vmem [thread:$0]  %s5, 2048, %s50, [#allocation5], 128, 128, 8
    $region25: #{_mlp_forward_impl.1} parent=1 // pred_fallthru
      _
    // Predicated region
    $region26: #{_mlp_forward_impl.1} parent=1 // pred_check
      _
    $region27: #{_mlp_forward_impl.1} parent=1 // pred_check_branch
      %57 = sbr.rel (0) target = $region29
    $region28: #{_mlp_forward_impl.1} parent=1 // pred_region
      _
    $region29: #{_mlp_forward_impl.1} parent=1 // pred_fallthru
      _
    // Predicated region
    $region30: #{_mlp_forward_impl.1} parent=1 // pred_check
      _
    $region31: #{_mlp_forward_impl.1} parent=1 // pred_check_branch
      %59 = sbr.rel (0) target = $region33
    $region32: #{_mlp_forward_impl.1} parent=1 // pred_region
      %60 = dma.done [#allocation3], 1024
    $region33: #{_mlp_forward_impl.1} parent=1 // pred_fallthru
      _
    // Predicated region
    $region34: #{_mlp_forward_impl.1} parent=1 // pred_check
      _
    $region35: #{_mlp_forward_impl.1} parent=1 // pred_check_branch
      %62 = sbr.rel (0) target = $region37
    $region36: #{_mlp_forward_impl.1} parent=1 // pred_region
      %63 = dma.done [#allocation5], 2048
    $region37: #{_mlp_forward_impl.1} parent=1 // pred_fallthru
      _
    // Predicated region
    $region38: #{_mlp_forward_impl.1} parent=1 // pred_check
      _
    $region39: #{_mlp_forward_impl.1} parent=1 // pred_check_branch
      %65 = sbr.rel (0) target = $region41
    $region40: #{_mlp_forward_impl.1} parent=1 // pred_region
      %66 = dma.done [#allocation5], 2048
    $region41: #{_mlp_forward_impl.1} parent=1 // pred_fallthru
      _
    %v67 = vld [vmem:[%s0] sm:$0xff]
    %v68 = vld [vmem:[#allocation2] sm:$0xff]
    %v69 = vld [vmem:[#allocation2 + $0x8] sm:$0xff]
    %v70 = vld [vmem:[#allocation2 + $0x10] sm:$0xff]
    %v71 = vld [vmem:[#allocation2 + $0x18] sm:$0xff]
    %v72 = vld [vmem:[#allocation2 + $0x20] sm:$0xff]
    %v73 = vld [vmem:[#allocation2 + $0x28] sm:$0xff]
    %v74 = vld [vmem:[#allocation2 + $0x30] sm:$0xff]
    %v75 = vld [vmem:[#allocation2 + $0x38] sm:$0xff]
    %v76 = vld [vmem:[%s2] sm:$0x1]
    %v78 = vlaneseq
    %v79 = vshrl.u32 %v78, 7
    %v80 = vsub.s32 0, %v79
    %v81 = vrot.slane %v76, %v80
    %vm83 = vcmask 523264
    %v85 = vsel %vm83, %v67, 0
    %87 = vmatprep.subr.mxu0 0.0
    %88 = vmatpush1.msra.mxu0 0.0
    %89 = vmatprep.subr.mxu0 0.0
    %90 = vmatpush1.msra.mxu0 0.0
    %91 = vmatprep.subr.mxu0 0.0
    %92 = vmatpush1.msra.mxu0 0.0
    %93 = vmatprep.subr.mxu0 0.0
    %94 = vmatpush1.msra.mxu0 0.0
    %95 = vmatprep.subr.mxu0 0.0
    %96 = vmatpush1.msra.mxu0 0.0
    %97 = vmatprep.subr.mxu0 0.0
    %98 = vmatpush1.msra.mxu0 0.0
    %99 = vmatprep.subr.mxu0 0.0
    %100 = vmatpush1.msra.mxu0 0.0
    %101 = vmatprep.subr.mxu0 0.0
    %102 = vmatpush1.msra.mxu0 0.0
    %103 = vmatprep.subr.mxu0 0.0
    %104 = vmatpush1.msra.mxu0 %v75
    %105 = vmatprep.subr.mxu0 0.0
    %106 = vmatpush1.msra.mxu0 %v74
    %107 = vmatprep.subr.mxu0 0.0
    %108 = vmatpush1.msra.mxu0 %v73
    %109 = vmatprep.subr.mxu0 0.0
    %110 = vmatpush1.msra.mxu0 %v72
    %111 = vmatprep.subr.mxu0 0.0
    %112 = vmatpush1.msra.mxu0 %v71
    %113 = vmatprep.subr.mxu0 0.0
    %114 = vmatpush1.msra.mxu0 %v70
    %115 = vmatprep.subr.mxu0 0.0
    %116 = vmatpush1.msra.mxu0 %v69
    %117 = vmatprep.subr.mxu0 0.0
    %118 = vmatpush1.msra.mxu0 %v68
    %119 = vmatprep.subr.mxu0 0.0
    %120 = vmatpush2.msra.mxu0 0.0
    %121 = vmatprep.subr.mxu0 0.0
    %122 = vmatpush2.msra.mxu0 0.0
    %123 = vmatprep.subr.mxu0 0.0
    %124 = vmatpush2.msra.mxu0 0.0
    %125 = vmatprep.subr.mxu0 0.0
    %126 = vmatpush2.msra.mxu0 0.0
    %127 = vmatprep.subr.mxu0 0.0
    %128 = vmatpush2.msra.mxu0 0.0
    %129 = vmatprep.subr.mxu0 0.0
    %130 = vmatpush2.msra.mxu0 0.0
    %131 = vmatprep.subr.mxu0 0.0
    %132 = vmatpush2.msra.mxu0 0.0
    %133 = vmatprep.subr.mxu0 0.0
    %134 = vmatpush2.msra.mxu0 0.0
    %135 = vmatprep.subr.mxu0 0.0
    %136 = vmatpush2.msra.mxu0 0.0
    %137 = vmatprep.subr.mxu0 0.0
    %138 = vmatpush2.msra.mxu0 0.0
    %139 = vmatprep.subr.mxu0 0.0
    %140 = vmatpush2.msra.mxu0 0.0
    %141 = vmatprep.subr.mxu0 0.0
    %142 = vmatpush2.msra.mxu0 0.0
    %143 = vmatprep.subr.mxu0 0.0
    %144 = vmatpush2.msra.mxu0 0.0
    %145 = vmatprep.subr.mxu0 0.0
    %146 = vmatpush2.msra.mxu0 0.0
    %147 = vmatprep.subr.mxu0 0.0
    %148 = vmatpush2.msra.mxu0 0.0
    %149 = vmatprep.subr.mxu0 0.0
    %150 = vmatpush2.msra.mxu0 0.0
    %151 = vmatprep.mubr.f32.mxu0 0.0
    %152 = vmatmul.mubr.f32.gmra.mxu0 %v85
    %v153 = vpop.f32.mrf.mxu0
    %v154 = vadd.f32 %v81, %v153
    %v155 = vpop.f32.mrf.mxu0
    %156 = vdwg.mxu0
    %v157 = vmax.f32 %v154, 0.0
    %v158 = vld [vmem:[#allocation4] sm:$0xff]
    %v159 = vld [vmem:[#allocation4 + $0x8] sm:$0xff]
    %v160 = vld [vmem:[#allocation4 + $0x10] sm:$0xff]
    %v161 = vld [vmem:[#allocation4 + $0x18] sm:$0xff]
    %v162 = vld [vmem:[#allocation4 + $0x20] sm:$0xff]
    %v163 = vld [vmem:[#allocation4 + $0x28] sm:$0xff]
    %v164 = vld [vmem:[#allocation4 + $0x30] sm:$0xff]
    %v165 = vld [vmem:[#allocation4 + $0x38] sm:$0xff]
    %v166 = vld [vmem:[#allocation4 + $0x40] sm:$0xff]
    %v167 = vld [vmem:[#allocation4 + $0x48] sm:$0xff]
    %v168 = vld [vmem:[#allocation4 + $0x50] sm:$0xff]
    %v169 = vld [vmem:[#allocation4 + $0x58] sm:$0xff]
    %v170 = vld [vmem:[#allocation4 + $0x60] sm:$0xff]
    %v171 = vld [vmem:[#allocation4 + $0x68] sm:$0xff]
    %v172 = vld [vmem:[#allocation4 + $0x70] sm:$0xff]
    %v173 = vld [vmem:[#allocation4 + $0x78] sm:$0xff]
    %v174 = vld [vmem:[%s4] sm:$0x1]
    %v176 = vlaneseq
    %v177 = vshrl.u32 %v176, 7
    %v178 = vsub.s32 0, %v177
    %v179 = vrot.slane %v174, %v178
    %181 = vmatprep.subr.mxu0 0.0
    %182 = vmatpush1.msra.mxu0 %v173
    %183 = vmatprep.subr.mxu0 0.0
    %184 = vmatpush1.msra.mxu0 %v172
    %185 = vmatprep.subr.mxu0 0.0
    %186 = vmatpush1.msra.mxu0 %v171
    %187 = vmatprep.subr.mxu0 0.0
    %188 = vmatpush1.msra.mxu0 %v170
    %189 = vmatprep.subr.mxu0 0.0
    %190 = vmatpush1.msra.mxu0 %v169
    %191 = vmatprep.subr.mxu0 0.0
    %192 = vmatpush1.msra.mxu0 %v168
    %193 = vmatprep.subr.mxu0 0.0
    %194 = vmatpush1.msra.mxu0 %v167
    %195 = vmatprep.subr.mxu0 0.0
    %196 = vmatpush1.msra.mxu0 %v166
    %197 = vmatprep.subr.mxu0 0.0
    %198 = vmatpush1.msra.mxu0 %v165
    %199 = vmatprep.subr.mxu0 0.0
    %200 = vmatpush1.msra.mxu0 %v164
    %201 = vmatprep.subr.mxu0 0.0
    %202 = vmatpush1.msra.mxu0 %v163
    %203 = vmatprep.subr.mxu0 0.0
    %204 = vmatpush1.msra.mxu0 %v162
    %205 = vmatprep.subr.mxu0 0.0
    %206 = vmatpush1.msra.mxu0 %v161
    %207 = vmatprep.subr.mxu0 0.0
    %208 = vmatpush1.msra.mxu0 %v160
    %209 = vmatprep.subr.mxu0 0.0
    %210 = vmatpush1.msra.mxu0 %v159
    %211 = vmatprep.subr.mxu0 0.0
    %212 = vmatpush1.msra.mxu0 %v158
    %213 = vmatprep.subr.mxu0 0.0
    %214 = vmatpush2.msra.mxu0 0.0
    %215 = vmatprep.subr.mxu0 0.0
    %216 = vmatpush2.msra.mxu0 0.0
    %217 = vmatprep.subr.mxu0 0.0
    %218 = vmatpush2.msra.mxu0 0.0
    %219 = vmatprep.subr.mxu0 0.0
    %220 = vmatpush2.msra.mxu0 0.0
    %221 = vmatprep.subr.mxu0 0.0
    %222 = vmatpush2.msra.mxu0 0.0
    %223 = vmatprep.subr.mxu0 0.0
    %224 = vmatpush2.msra.mxu0 0.0
    %225 = vmatprep.subr.mxu0 0.0
    %226 = vmatpush2.msra.mxu0 0.0
    %227 = vmatprep.subr.mxu0 0.0
    %228 = vmatpush2.msra.mxu0 0.0
    %229 = vmatprep.subr.mxu0 0.0
    %230 = vmatpush2.msra.mxu0 0.0
    %231 = vmatprep.subr.mxu0 0.0
    %232 = vmatpush2.msra.mxu0 0.0
    %233 = vmatprep.subr.mxu0 0.0
    %234 = vmatpush2.msra.mxu0 0.0
    %235 = vmatprep.subr.mxu0 0.0
    %236 = vmatpush2.msra.mxu0 0.0
    %237 = vmatprep.subr.mxu0 0.0
    %238 = vmatpush2.msra.mxu0 0.0
    %239 = vmatprep.subr.mxu0 0.0
    %240 = vmatpush2.msra.mxu0 0.0
    %241 = vmatprep.subr.mxu0 0.0
    %242 = vmatpush2.msra.mxu0 0.0
    %243 = vmatprep.subr.mxu0 0.0
    %244 = vmatpush2.msra.mxu0 0.0
    %245 = vmatprep.mubr.f32.mxu0 0.0
    %246 = vmatmul.mubr.f32.gmra.mxu0 %v157
    %v247 = vpop.f32.mrf.mxu0
    %v248 = vadd.f32 %v179, %v247
    %v249 = vpop.f32.mrf.mxu0
    %250 = vdwg.mxu0
    %v251 = vmax.f32 %v248, 0.0
    %v252 = vld [vmem:[#allocation6] sm:$0xff]
    %v253 = vld [vmem:[#allocation6 + $0x8] sm:$0xff]
    %v254 = vld [vmem:[#allocation6 + $0x10] sm:$0xff]
    %v255 = vld [vmem:[#allocation6 + $0x18] sm:$0xff]
    %v256 = vld [vmem:[#allocation6 + $0x20] sm:$0xff]
    %v257 = vld [vmem:[#allocation6 + $0x28] sm:$0xff]
    %v258 = vld [vmem:[#allocation6 + $0x30] sm:$0xff]
    %v259 = vld [vmem:[#allocation6 + $0x38] sm:$0xff]
    %v260 = vld [vmem:[#allocation6 + $0x40] sm:$0xff]
    %v261 = vld [vmem:[#allocation6 + $0x48] sm:$0xff]
    %v262 = vld [vmem:[#allocation6 + $0x50] sm:$0xff]
    %v263 = vld [vmem:[#allocation6 + $0x58] sm:$0xff]
    %v264 = vld [vmem:[#allocation6 + $0x60] sm:$0xff]
    %v265 = vld [vmem:[#allocation6 + $0x68] sm:$0xff]
    %v266 = vld [vmem:[#allocation6 + $0x70] sm:$0xff]
    %v267 = vld [vmem:[#allocation6 + $0x78] sm:$0xff]
    %v268 = vld [vmem:[%s6] sm:$0x1]
    %v270 = vlaneseq
    %v271 = vshrl.u32 %v270, 7
    %v272 = vsub.s32 0, %v271
    %v273 = vrot.slane %v268, %v272
    %275 = vmatprep.subr.mxu0 0.0
    %276 = vmatpush1.msra.mxu0 %v267
    %277 = vmatprep.subr.mxu0 0.0
    %278 = vmatpush1.msra.mxu0 %v266
    %279 = vmatprep.subr.mxu0 0.0
    %280 = vmatpush1.msra.mxu0 %v265
    %281 = vmatprep.subr.mxu0 0.0
    %282 = vmatpush1.msra.mxu0 %v264
    %283 = vmatprep.subr.mxu0 0.0
    %284 = vmatpush1.msra.mxu0 %v263
    %285 = vmatprep.subr.mxu0 0.0
    %286 = vmatpush1.msra.mxu0 %v262
    %287 = vmatprep.subr.mxu0 0.0
    %288 = vmatpush1.msra.mxu0 %v261
    %289 = vmatprep.subr.mxu0 0.0
    %290 = vmatpush1.msra.mxu0 %v260
    %291 = vmatprep.subr.mxu0 0.0
    %292 = vmatpush1.msra.mxu0 %v259
    %293 = vmatprep.subr.mxu0 0.0
    %294 = vmatpush1.msra.mxu0 %v258
    %295 = vmatprep.subr.mxu0 0.0
    %296 = vmatpush1.msra.mxu0 %v257
    %297 = vmatprep.subr.mxu0 0.0
    %298 = vmatpush1.msra.mxu0 %v256
    %299 = vmatprep.subr.mxu0 0.0
    %300 = vmatpush1.msra.mxu0 %v255
    %301 = vmatprep.subr.mxu0 0.0
    %302 = vmatpush1.msra.mxu0 %v254
    %303 = vmatprep.subr.mxu0 0.0
    %304 = vmatpush1.msra.mxu0 %v253
    %305 = vmatprep.subr.mxu0 0.0
    %306 = vmatpush1.msra.mxu0 %v252
    %307 = vmatprep.subr.mxu0 0.0
    %308 = vmatpush2.msra.mxu0 0.0
    %309 = vmatprep.subr.mxu0 0.0
    %310 = vmatpush2.msra.mxu0 0.0
    %311 = vmatprep.subr.mxu0 0.0
    %312 = vmatpush2.msra.mxu0 0.0
    %313 = vmatprep.subr.mxu0 0.0
    %314 = vmatpush2.msra.mxu0 0.0
    %315 = vmatprep.subr.mxu0 0.0
    %316 = vmatpush2.msra.mxu0 0.0
    %317 = vmatprep.subr.mxu0 0.0
    %318 = vmatpush2.msra.mxu0 0.0
    %319 = vmatprep.subr.mxu0 0.0
    %320 = vmatpush2.msra.mxu0 0.0
    %321 = vmatprep.subr.mxu0 0.0
    %322 = vmatpush2.msra.mxu0 0.0
    %323 = vmatprep.subr.mxu0 0.0
    %324 = vmatpush2.msra.mxu0 0.0
    %325 = vmatprep.subr.mxu0 0.0
    %326 = vmatpush2.msra.mxu0 0.0
    %327 = vmatprep.subr.mxu0 0.0
    %328 = vmatpush2.msra.mxu0 0.0
    %329 = vmatprep.subr.mxu0 0.0
    %330 = vmatpush2.msra.mxu0 0.0
    %331 = vmatprep.subr.mxu0 0.0
    %332 = vmatpush2.msra.mxu0 0.0
    %333 = vmatprep.subr.mxu0 0.0
    %334 = vmatpush2.msra.mxu0 0.0
    %335 = vmatprep.subr.mxu0 0.0
    %336 = vmatpush2.msra.mxu0 0.0
    %337 = vmatprep.subr.mxu0 0.0
    %338 = vmatpush2.msra.mxu0 0.0
    %339 = vmatprep.mubr.f32.mxu0 0.0
    %340 = vmatmul.mubr.f32.gmra.mxu0 %v251
    %v341 = vpop.f32.mrf.mxu0
    %v342 = vadd.f32 %v273, %v341
    %v343 = vpop.f32.mrf.mxu0
    %344 = vdwg.mxu0
    %345 = vst [vmem:[%s7] sm:$0xff] %v342
    // Predicated region
    $region42: #{_mlp_forward_impl.1} parent=1 // pred_check
      _
    $region43: #{_mlp_forward_impl.1} parent=1 // pred_check_branch
      %347 = sbr.rel (0) target = $region45
    $region44: #{_mlp_forward_impl.1} parent=1 // pred_region
      _
    $region45: #{_mlp_forward_impl.1} parent=1 // pred_fallthru
      _
    // Predicated region
    $region46: #{_mlp_forward_impl.1} parent=1 // pred_check
      _
    $region47: #{_mlp_forward_impl.1} parent=1 // pred_check_branch
      %349 = sbr.rel (0) target = $region49
    $region48: #{_mlp_forward_impl.1} parent=1 // pred_region
      _
    $region49: #{_mlp_forward_impl.1} parent=1 // pred_fallthru
      _
    %350 = vsyncpa [#allocation3], 1
    %351 = vsyncpa [#allocation5], 1

// kernel: _mlp_forward_impl.1
$region0: #{_mlp_forward_impl.1}
  #allocation0 [shape = 'u32[]', space=smem, size = 0x4, offset = 0x4, fixed_abs, tag = 'smem constant byte address 0x4 - core index']
  #allocation1 [shape = 'u32[144,128]{1,0:T(1,128)}', space=vmem, size = 0x12000, scoped, tag = 'internal scratch']
  %s0 = inlined_call_operand.vmem [shape: f32[8,64], index: 0, kind: input, shape index: {}]
  %s1 = inlined_call_operand.hbm [shape: f32[64,128], index: 1, kind: input, shape index: {}]
  %s2 = inlined_call_operand.vmem [shape: f32[1,128], index: 2, kind: input, shape index: {}]
  %s3 = inlined_call_operand.hbm [shape: f32[128,128], index: 3, kind: input, shape index: {}]
  %s4 = inlined_call_operand.vmem [shape: f32[1,128], index: 4, kind: input, shape index: {}]
  %s5 = inlined_call_operand.hbm [shape: f32[128,128], index: 5, kind: input, shape index: {}]
  %s6 = inlined_call_operand.vmem [shape: f32[1,128], index: 6, kind: input, shape index: {}]
  %s7 = inlined_call_operand.vmem [shape: f32[8,128], index: 7, kind: output, shape index: {}]
  %s8 = sld [smem:[#allocation0]]
  $region50: #{_mlp_forward_impl.1} parent=0
    _
  %s10 = ssub.s32 1, %s8
  %s11 = scalar_select 0, %s10, %s8
  $region1: #{_mlp_forward_impl.1} parent=0
    #allocation2 [shape = 'u8[32768]{0}', space=vmem, size = 0x8000, scoped, tag = 'input window, operand 1, single buffered']
    #allocation3 [shape = 's32[1]{0}', space=sflag, size = 0x4, scoped, tag = 'scoped memory for _mlp_forward_impl.1']
    #allocation4 [shape = 'u8[65536]{0}', space=vmem, size = 0x10000, scoped, tag = 'input window, operand 3, single buffered']
    #allocation5 [shape = 's32[1]{0}', space=sflag, size = 0x4, scoped, tag = 'scoped memory for _mlp_forward_impl.1']
    #allocation6 [shape = 'u8[65536]{0}', space=vmem, size = 0x10000, scoped, tag = 'input window, operand 5, single buffered']
    %12 = vsyncpa [#allocation3], 0
    %13 = vsyncpa [#allocation5], 0
    // Predicated region
    $region2: #{_mlp_forward_impl.1} parent=1 // pred_check
      _
    $region3: #{_mlp_forward_impl.1} parent=1 // pred_check_branch
      %15 = sbr.rel (0) target = $region5
    $region4: #{_mlp_forward_impl.1} parent=1 // pred_region
      _
    $region5: #{_mlp_forward_impl.1} parent=1 // pred_fallthru
      _
    // Predicated region
    $region6: #{_mlp_forward_impl.1} parent=1 // pred_check
      _
    $region7: #{_mlp_forward_impl.1} parent=1 // pred_check_branch
      %17 = sbr.rel (0) target = $region9
    $region8: #{_mlp_forward_impl.1} parent=1 // pred_region
      %s19 = ssub.s32 1024, 1024
      %20 = vsyncadd [#allocation3], %s19
      %s21 = sshll.u32 [#allocation2], 4
      %s22 = int_to_ptr.vmem [resolvable:$true] %s21
      %27 = dma.hbm_to_vmem [thread:$0]  %s1, 1024, %s22, [#allocation3], 128, 128, 8
    $region9: #{_mlp_forward_impl.1} parent=1 // pred_fallthru
      _
    // Predicated region
    $region10: #{_mlp_forward_impl.1} parent=1 // pred_check
      _
    $region11: #{_mlp_forward_impl.1} parent=1 // pred_check_branch
      %29 = sbr.rel (0) target = $region13
    $region12: #{_mlp_forward_impl.1} parent=1 // pred_region
      _
    $region13: #{_mlp_forward_impl.1} parent=1 // pred_fallthru
      _
    // Predicated region
    $region14: #{_mlp_forward_impl.1} parent=1 // pred_check
      _
    $region15: #{_mlp_forward_impl.1} parent=1 // pred_check_branch
      %31 = sbr.rel (0) target = $region17
    $region16: #{_mlp_forward_impl.1} parent=1 // pred_region
      %s33 = ssub.s32 2048, 2048
      %34 = vsyncadd [#allocation5], %s33
      %s35 = sshll.u32 [#allocation4], 4
      %s36 = int_to_ptr.vmem [resolvable:$true] %s35
      %41 = dma.hbm_to_vmem [thread:$0]  %s3, 2048, %s36, [#allocation5], 128, 128, 8
    $region17: #{_mlp_forward_impl.1} parent=1 // pred_fallthru
      _
    // Predicated region
    $region18: #{_mlp_forward_impl.1} parent=1 // pred_check
      _
    $region19: #{_mlp_forward_impl.1} parent=1 // pred_check_branch
      %43 = sbr.rel (0) target = $region21
    $region20: #{_mlp_forward_impl.1} parent=1 // pred_region
      _
    $region21: #{_mlp_forward_impl.1} parent=1 // pred_fallthru
      _
    // Predicated region
    $region22: #{_mlp_forward_impl.1} parent=1 // pred_check
      _
    $region23: #{_mlp_forward_impl.1} parent=1 // pred_check_branch
      %45 = sbr.rel (0) target = $region25
    $region24: #{_mlp_forward_impl.1} parent=1 // pred_region
      %s47 = ssub.s32 2048, 2048
      %48 = vsyncadd [#allocation5], %s47
      %s49 = sshll.u32 [#allocation6], 4
      %s50 = int_to_ptr.vmem [resolvable:$true] %s49
      %55 = dma.hbm_to_vmem [thread:$0]  %s5, 2048, %s50, [#allocation5], 128, 128, 8
    $region25: #{_mlp_forward_impl.1} parent=1 // pred_fallthru
      _
    // Predicated region
    $region26: #{_mlp_forward_impl.1} parent=1 // pred_check
      _
    $region27: #{_mlp_forward_impl.1} parent=1 // pred_check_branch
      %57 = sbr.rel (0) target = $region29
    $region28: #{_mlp_forward_impl.1} parent=1 // pred_region
      _
    $region29: #{_mlp_forward_impl.1} parent=1 // pred_fallthru
      _
    // Predicated region
    $region30: #{_mlp_forward_impl.1} parent=1 // pred_check
      _
    $region31: #{_mlp_forward_impl.1} parent=1 // pred_check_branch
      %59 = sbr.rel (0) target = $region33
    $region32: #{_mlp_forward_impl.1} parent=1 // pred_region
      %60 = dma.done [#allocation3], 1024
    $region33: #{_mlp_forward_impl.1} parent=1 // pred_fallthru
      _
    // Predicated region
    $region34: #{_mlp_forward_impl.1} parent=1 // pred_check
      _
    $region35: #{_mlp_forward_impl.1} parent=1 // pred_check_branch
      %62 = sbr.rel (0) target = $region37
    $region36: #{_mlp_forward_impl.1} parent=1 // pred_region
      %63 = dma.done [#allocation5], 2048
    $region37: #{_mlp_forward_impl.1} parent=1 // pred_fallthru
      _
    // Predicated region
    $region38: #{_mlp_forward_impl.1} parent=1 // pred_check
      _
    $region39: #{_mlp_forward_impl.1} parent=1 // pred_check_branch
      %65 = sbr.rel (0) target = $region41
    $region40: #{_mlp_forward_impl.1} parent=1 // pred_region
      %66 = dma.done [#allocation5], 2048
    $region41: #{_mlp_forward_impl.1} parent=1 // pred_fallthru
      _
    %v67 = vld [vmem:[%s0] sm:$0xff]
    %v68 = vld [vmem:[#allocation2] sm:$0xff]
    %v69 = vld [vmem:[#allocation2 + $0x8] sm:$0xff]
    %v70 = vld [vmem:[#allocation2 + $0x10] sm:$0xff]
    %v71 = vld [vmem:[#allocation2 + $0x18] sm:$0xff]
    %v72 = vld [vmem:[#allocation2 + $0x20] sm:$0xff]
    %v73 = vld [vmem:[#allocation2 + $0x28] sm:$0xff]
    %v74 = vld [vmem:[#allocation2 + $0x30] sm:$0xff]
    %v75 = vld [vmem:[#allocation2 + $0x38] sm:$0xff]
    %v76 = vld [vmem:[%s2] sm:$0x1]
    %v78 = vlaneseq
    %v79 = vshrl.u32 %v78, 7
    %v80 = vsub.s32 0, %v79
    %v81 = vrot.slane %v76, %v80
    %vm83 = vcmask 523264
    %v85 = vsel %vm83, %v67, 0
    %87 = vmatprep.subr.mxu0 0.0
    %88 = vmatpush1.msra.mxu0 0.0
    %89 = vmatprep.subr.mxu0 0.0
    %90 = vmatpush1.msra.mxu0 0.0
    %91 = vmatprep.subr.mxu0 0.0
    %92 = vmatpush1.msra.mxu0 0.0
    %93 = vmatprep.subr.mxu0 0.0
    %94 = vmatpush1.msra.mxu0 0.0
    %95 = vmatprep.subr.mxu0 0.0
    %96 = vmatpush1.msra.mxu0 0.0
    %97 = vmatprep.subr.mxu0 0.0
    %98 = vmatpush1.msra.mxu0 0.0
    %99 = vmatprep.subr.mxu0 0.0
    %100 = vmatpush1.msra.mxu0 0.0
    %101 = vmatprep.subr.mxu0 0.0
    %102 = vmatpush1.msra.mxu0 0.0
    %103 = vmatprep.subr.mxu0 0.0
    %104 = vmatpush1.msra.mxu0 %v75
    %105 = vmatprep.subr.mxu0 0.0
    %106 = vmatpush1.msra.mxu0 %v74
    %107 = vmatprep.subr.mxu0 0.0
    %108 = vmatpush1.msra.mxu0 %v73
    %109 = vmatprep.subr.mxu0 0.0
    %110 = vmatpush1.msra.mxu0 %v72
    %111 = vmatprep.subr.mxu0 0.0
    %112 = vmatpush1.msra.mxu0 %v71
    %113 = vmatprep.subr.mxu0 0.0
    %114 = vmatpush1.msra.mxu0 %v70
    %115 = vmatprep.subr.mxu0 0.0
    %116 = vmatpush1.msra.mxu0 %v69
    %117 = vmatprep.subr.mxu0 0.0
    %118 = vmatpush1.msra.mxu0 %v68
    %119 = vmatprep.subr.mxu0 0.0
    %120 = vmatpush2.msra.mxu0 0.0
    %121 = vmatprep.subr.mxu0 0.0
    %122 = vmatpush2.msra.mxu0 0.0
    %123 = vmatprep.subr.mxu0 0.0
    %124 = vmatpush2.msra.mxu0 0.0
    %125 = vmatprep.subr.mxu0 0.0
    %126 = vmatpush2.msra.mxu0 0.0
    %127 = vmatprep.subr.mxu0 0.0
    %128 = vmatpush2.msra.mxu0 0.0
    %129 = vmatprep.subr.mxu0 0.0
    %130 = vmatpush2.msra.mxu0 0.0
    %131 = vmatprep.subr.mxu0 0.0
    %132 = vmatpush2.msra.mxu0 0.0
    %133 = vmatprep.subr.mxu0 0.0
    %134 = vmatpush2.msra.mxu0 0.0
    %135 = vmatprep.subr.mxu0 0.0
    %136 = vmatpush2.msra.mxu0 0.0
    %137 = vmatprep.subr.mxu0 0.0
    %138 = vmatpush2.msra.mxu0 0.0
    %139 = vmatprep.subr.mxu0 0.0
    %140 = vmatpush2.msra.mxu0 0.0
    %141 = vmatprep.subr.mxu0 0.0
    %142 = vmatpush2.msra.mxu0 0.0
    %143 = vmatprep.subr.mxu0 0.0
    %144 = vmatpush2.msra.mxu0 0.0
    %145 = vmatprep.subr.mxu0 0.0
    %146 = vmatpush2.msra.mxu0 0.0
    %147 = vmatprep.subr.mxu0 0.0
    %148 = vmatpush2.msra.mxu0 0.0
    %149 = vmatprep.subr.mxu0 0.0
    %150 = vmatpush2.msra.mxu0 0.0
    %151 = vmatprep.mubr.f32.mxu0 0.0
    %152 = vmatmul.mubr.f32.gmra.mxu0 %v85
    %v153 = vpop.f32.mrf.mxu0
    %v154 = vadd.f32 %v81, %v153
    %v155 = vpop.f32.mrf.mxu0
    %156 = vdwg.mxu0
    %v157 = vmax.f32 %v154, 0.0
    %v158 = vld [vmem:[#allocation4] sm:$0xff]
    %v159 = vld [vmem:[#allocation4 + $0x8] sm:$0xff]
    %v160 = vld [vmem:[#allocation4 + $0x10] sm:$0xff]
    %v161 = vld [vmem:[#allocation4 + $0x18] sm:$0xff]
    %v162 = vld [vmem:[#allocation4 + $0x20] sm:$0xff]
    %v163 = vld [vmem:[#allocation4 + $0x28] sm:$0xff]
    %v164 = vld [vmem:[#allocation4 + $0x30] sm:$0xff]
    %v165 = vld [vmem:[#allocation4 + $0x38] sm:$0xff]
    %v166 = vld [vmem:[#allocation4 + $0x40] sm:$0xff]
    %v167 = vld [vmem:[#allocation4 + $0x48] sm:$0xff]
    %v168 = vld [vmem:[#allocation4 + $0x50] sm:$0xff]
    %v169 = vld [vmem:[#allocation4 + $0x58] sm:$0xff]
    %v170 = vld [vmem:[#allocation4 + $0x60] sm:$0xff]
    %v171 = vld [vmem:[#allocation4 + $0x68] sm:$0xff]
    %v172 = vld [vmem:[#allocation4 + $0x70] sm:$0xff]
    %v173 = vld [vmem:[#allocation4 + $0x78] sm:$0xff]
    %v174 = vld [vmem:[%s4] sm:$0x1]
    %v176 = vlaneseq
    %v177 = vshrl.u32 %v176, 7
    %v178 = vsub.s32 0, %v177
    %v179 = vrot.slane %v174, %v178
    %181 = vmatprep.subr.mxu0 0.0
    %182 = vmatpush1.msra.mxu0 %v173
    %183 = vmatprep.subr.mxu0 0.0
    %184 = vmatpush1.msra.mxu0 %v172
    %185 = vmatprep.subr.mxu0 0.0
    %186 = vmatpush1.msra.mxu0 %v171
    %187 = vmatprep.subr.mxu0 0.0
    %188 = vmatpush1.msra.mxu0 %v170
    %189 = vmatprep.subr.mxu0 0.0
    %190 = vmatpush1.msra.mxu0 %v169
    %191 = vmatprep.subr.mxu0 0.0
    %192 = vmatpush1.msra.mxu0 %v168
    %193 = vmatprep.subr.mxu0 0.0
    %194 = vmatpush1.msra.mxu0 %v167
    %195 = vmatprep.subr.mxu0 0.0
    %196 = vmatpush1.msra.mxu0 %v166
    %197 = vmatprep.subr.mxu0 0.0
    %198 = vmatpush1.msra.mxu0 %v165
    %199 = vmatprep.subr.mxu0 0.0
    %200 = vmatpush1.msra.mxu0 %v164
    %201 = vmatprep.subr.mxu0 0.0
    %202 = vmatpush1.msra.mxu0 %v163
    %203 = vmatprep.subr.mxu0 0.0
    %204 = vmatpush1.msra.mxu0 %v162
    %205 = vmatprep.subr.mxu0 0.0
    %206 = vmatpush1.msra.mxu0 %v161
    %207 = vmatprep.subr.mxu0 0.0
    %208 = vmatpush1.msra.mxu0 %v160
    %209 = vmatprep.subr.mxu0 0.0
    %210 = vmatpush1.msra.mxu0 %v159
    %211 = vmatprep.subr.mxu0 0.0
    %212 = vmatpush1.msra.mxu0 %v158
    %213 = vmatprep.subr.mxu0 0.0
    %214 = vmatpush2.msra.mxu0 0.0
    %215 = vmatprep.subr.mxu0 0.0
    %216 = vmatpush2.msra.mxu0 0.0
    %217 = vmatprep.subr.mxu0 0.0
    %218 = vmatpush2.msra.mxu0 0.0
    %219 = vmatprep.subr.mxu0 0.0
    %220 = vmatpush2.msra.mxu0 0.0
    %221 = vmatprep.subr.mxu0 0.0
    %222 = vmatpush2.msra.mxu0 0.0
    %223 = vmatprep.subr.mxu0 0.0
    %224 = vmatpush2.msra.mxu0 0.0
    %225 = vmatprep.subr.mxu0 0.0
    %226 = vmatpush2.msra.mxu0 0.0
    %227 = vmatprep.subr.mxu0 0.0
    %228 = vmatpush2.msra.mxu0 0.0
    %229 = vmatprep.subr.mxu0 0.0
    %230 = vmatpush2.msra.mxu0 0.0
    %231 = vmatprep.subr.mxu0 0.0
    %232 = vmatpush2.msra.mxu0 0.0
    %233 = vmatprep.subr.mxu0 0.0
    %234 = vmatpush2.msra.mxu0 0.0
    %235 = vmatprep.subr.mxu0 0.0
    %236 = vmatpush2.msra.mxu0 0.0
    %237 = vmatprep.subr.mxu0 0.0
    %238 = vmatpush2.msra.mxu0 0.0
    %239 = vmatprep.subr.mxu0 0.0
    %240 = vmatpush2.msra.mxu0 0.0
    %241 = vmatprep.subr.mxu0 0.0
    %242 = vmatpush2.msra.mxu0 0.0
    %243 = vmatprep.subr.mxu0 0.0
    %244 = vmatpush2.msra.mxu0 0.0
    %245 = vmatprep.mubr.f32.mxu0 0.0
    %246 = vmatmul.mubr.f32.gmra.mxu0 %v157
    %v247 = vpop.f32.mrf.mxu0
    %v248 = vadd.f32 %v179, %v247
    %v249 = vpop.f32.mrf.mxu0
    %250 = vdwg.mxu0
    %v251 = vmax.f32 %v248, 0.0
    %v252 = vld [vmem:[#allocation6] sm:$0xff]
    %v253 = vld [vmem:[#allocation6 + $0x8] sm:$0xff]
    %v254 = vld [vmem:[#allocation6 + $0x10] sm:$0xff]
    %v255 = vld [vmem:[#allocation6 + $0x18] sm:$0xff]
    %v256 = vld [vmem:[#allocation6 + $0x20] sm:$0xff]
    %v257 = vld [vmem:[#allocation6 + $0x28] sm:$0xff]
    %v258 = vld [vmem:[#allocation6 + $0x30] sm:$0xff]
    %v259 = vld [vmem:[#allocation6 + $0x38] sm:$0xff]
    %v260 = vld [vmem:[#allocation6 + $0x40] sm:$0xff]
    %v261 = vld [vmem:[#allocation6 + $0x48] sm:$0xff]
    %v262 = vld [vmem:[#allocation6 + $0x50] sm:$0xff]
    %v263 = vld [vmem:[#allocation6 + $0x58] sm:$0xff]
    %v264 = vld [vmem:[#allocation6 + $0x60] sm:$0xff]
    %v265 = vld [vmem:[#allocation6 + $0x68] sm:$0xff]
    %v266 = vld [vmem:[#allocation6 + $0x70] sm:$0xff]
    %v267 = vld [vmem:[#allocation6 + $0x78] sm:$0xff]
    %v268 = vld [vmem:[%s6] sm:$0x1]
    %v270 = vlaneseq
    %v271 = vshrl.u32 %v270, 7
    %v272 = vsub.s32 0, %v271
    %v273 = vrot.slane %v268, %v272
    %275 = vmatprep.subr.mxu0 0.0
    %276 = vmatpush1.msra.mxu0 %v267
    %277 = vmatprep.subr.mxu0 0.0
    %278 = vmatpush1.msra.mxu0 %v266
    %279 = vmatprep.subr.mxu0 0.0
    %280 = vmatpush1.msra.mxu0 %v265
    %281 = vmatprep.subr.mxu0 0.0
    %282 = vmatpush1.msra.mxu0 %v264
    %283 = vmatprep.subr.mxu0 0.0
    %284 = vmatpush1.msra.mxu0 %v263
    %285 = vmatprep.subr.mxu0 0.0
    %286 = vmatpush1.msra.mxu0 %v262
    %287 = vmatprep.subr.mxu0 0.0
    %288 = vmatpush1.msra.mxu0 %v261
    %289 = vmatprep.subr.mxu0 0.0
    %290 = vmatpush1.msra.mxu0 %v260
    %291 = vmatprep.subr.mxu0 0.0
    %292 = vmatpush1.msra.mxu0 %v259
    %293 = vmatprep.subr.mxu0 0.0
    %294 = vmatpush1.msra.mxu0 %v258
    %295 = vmatprep.subr.mxu0 0.0
    %296 = vmatpush1.msra.mxu0 %v257
    %297 = vmatprep.subr.mxu0 0.0
    %298 = vmatpush1.msra.mxu0 %v256
    %299 = vmatprep.subr.mxu0 0.0
    %300 = vmatpush1.msra.mxu0 %v255
    %301 = vmatprep.subr.mxu0 0.0
    %302 = vmatpush1.msra.mxu0 %v254
    %303 = vmatprep.subr.mxu0 0.0
    %304 = vmatpush1.msra.mxu0 %v253
    %305 = vmatprep.subr.mxu0 0.0
    %306 = vmatpush1.msra.mxu0 %v252
    %307 = vmatprep.subr.mxu0 0.0
    %308 = vmatpush2.msra.mxu0 0.0
    %309 = vmatprep.subr.mxu0 0.0
    %310 = vmatpush2.msra.mxu0 0.0
    %311 = vmatprep.subr.mxu0 0.0
    %312 = vmatpush2.msra.mxu0 0.0
    %313 = vmatprep.subr.mxu0 0.0
    %314 = vmatpush2.msra.mxu0 0.0
    %315 = vmatprep.subr.mxu0 0.0
    %316 = vmatpush2.msra.mxu0 0.0
    %317 = vmatprep.subr.mxu0 0.0
    %318 = vmatpush2.msra.mxu0 0.0
    %319 = vmatprep.subr.mxu0 0.0
    %320 = vmatpush2.msra.mxu0 0.0
    %321 = vmatprep.subr.mxu0 0.0
    %322 = vmatpush2.msra.mxu0 0.0
    %323 = vmatprep.subr.mxu0 0.0
    %324 = vmatpush2.msra.mxu0 0.0
    %325 = vmatprep.subr.mxu0 0.0
    %326 = vmatpush2.msra.mxu0 0.0
    %327 = vmatprep.subr.mxu0 0.0
    %328 = vmatpush2.msra.mxu0 0.0
    %329 = vmatprep.subr.mxu0 0.0
    %330 = vmatpush2.msra.mxu0 0.0
    %331 = vmatprep.subr.mxu0 0.0
    %332 = vmatpush2.msra.mxu0 0.0
    %333 = vmatprep.subr.mxu0 0.0
    %334 = vmatpush2.msra.mxu0 0.0
    %335 = vmatprep.subr.mxu0 0.0
    %336 = vmatpush2.msra.mxu0 0.0
    %337 = vmatprep.subr.mxu0 0.0
    %338 = vmatpush2.msra.mxu0 0.0
    %339 = vmatprep.mubr.f32.mxu0 0.0
    %340 = vmatmul.mubr.f32.gmra.mxu0 %v251
    %v341 = vpop.f32.mrf.mxu0
    %v342 = vadd.f32 %v273, %v341
    %v343 = vpop.f32.mrf.mxu0
    %344 = vdwg.mxu0
    %345 = vst [vmem:[%s7] sm:$0xff] %v342
    // Predicated region
    $region42: #{_mlp_forward_impl.1} parent=1 // pred_check
      _
    $region43: #{_mlp_forward_impl.1} parent=1 // pred_check_branch
      %347 = sbr.rel (0) target = $region45
    $region44: #{_mlp_forward_impl.1} parent=1 // pred_region
      _
    $region45: #{_mlp_forward_impl.1} parent=1 // pred_fallthru
      _
    // Predicated region
    $region46: #{_mlp_forward_impl.1} parent=1 // pred_check
      _
    $region47: #{_mlp_forward_impl.1} parent=1 // pred_check_branch
      %349 = sbr.rel (0) target = $region49
    $region48: #{_mlp_forward_impl.1} parent=1 // pred_region
      _
    $region49: #{_mlp_forward_impl.1} parent=1 // pred_fallthru
      _
    %350 = vsyncpa [#allocation3], 1
    %351 = vsyncpa [#allocation5], 1

</llo_original>
